<compile_context>
chip_gen: v7x
topology: tpu7x:2x2x1
jax: 0.10.0
libtpu: 0.0.40
codegen_flags: <defaults>
</compile_context>

<pallas_src>
import jax
import jax.numpy as jnp
from jax.experimental import pallas as pl
from jax.experimental.pallas import tpu as pltpu


def _round_up(x, m):
    return (x + m - 1) // m * m


def _cdiv(a, b):
    return (a + b - 1) // b


def conv_block_forward(x, weight, bias, *, compute_dtype=jnp.bfloat16):
    """relu(conv2d(x, weight, bias, stride=2, padding=0)).

    x: [N, Cin, H, W] (NCHW), weight: [Cout, Cin, 3, 3], bias: [Cout].
    Returns NCHW output (cast back to x.dtype), matching the PyTorch module.
    """
    N, Cin, H, W = x.shape
    Cout = weight.shape[0]
    assert weight.shape == (Cout, Cin, 3, 3) and H >= 3 and W >= 3

    Hout = (H - 3) // 2 + 1
    Wout = (W - 3) // 2 + 1

    # ---- host-side layout plumbing (fused by XLA under jit, ~1x input bytes) ----
    Hp, Wp = _round_up(H, 2), _round_up(W, 2)
    x_p = x
    if (Hp, Wp) != (H, W):
        x_p = jnp.pad(x, ((0, 0), (0, 0), (0, Hp - H), (0, Wp - W)))
    Hd2, Wd2 = Hp // 2, Wp // 2
    K4 = 4 * Cin
    # xs[n, h2, w2, (ph*2+pw)*Cin + c] = x[n, c, 2*h2+ph, 2*w2+pw]
    xs = x_p.reshape(N, Cin, Hd2, 2, Wd2, 2)
    xs = xs.transpose(0, 2, 4, 3, 5, 1).reshape(N, Hd2, Wd2, K4)
    xs = xs.astype(compute_dtype)

    # Row tile: aim for MXU M = TH*Wd2 >= 256 while keeping the double-buffered input
    # tile small (v7x has only 64 MiB physical / 32 MiB default scoped VMEM).
    itemsize = jnp.dtype(compute_dtype).itemsize
    row_bytes = Wd2 * K4 * itemsize
    th = max(1, min(Hout, _cdiv(256, Wd2),
                    max(1, (2 * 1024 * 1024) // max(1, row_bytes))))
    if N * _cdiv(Hout, th) < 2 and Hout >= 2:
        th = _cdiv(Hout, 2)  # keep >=2 grid steps so both v7x TensorCores get work
    n_ht = _cdiv(Hout, th)
    th_in = th + 2           # halo: TH output rows read s2d rows [0, TH+1); the flattened
                             # "garbage" column (wo >= Wout) can touch one row further.

    # Pad the s2d row axis so every tile window is in range, then gather the overlapping
    # windows into non-overlapping per-tile blocks and flatten (h2, w2) -> rows.
    hd2_need = n_ht * th + 2
    xs = jnp.pad(xs, ((0, 0), (0, hd2_need - Hd2), (0, 0), (0, 0)))
    tile_rows = jnp.arange(n_ht)[:, None] * th + jnp.arange(th_in)[None, :]
    x3 = xs[:, tile_rows]                                    # [N, n_ht, th_in, Wd2, K4]
    x3 = x3.reshape(N, n_ht, th_in * Wd2, K4)

    # Merge the 9 conv taps into 4 (ih, iw) weight slabs over the s2d channel dim; the
    # zero (ph,pw)=(1,1) slots make the even-H/W padding contribute exactly 0.
    w4 = jnp.zeros((2, 2, 2, 2, Cin, Cout), weight.dtype)    # [ih, iw, ph, pw, c, o]
    for kh in range(3):
        for kw in range(3):
            ih, ph = kh // 2, kh % 2
            iw, pw = kw // 2, kw % 2
            w4 = w4.at[ih, iw, ph, pw].set(weight[:, :, kh, kw].T)
    w4 = w4.reshape(4, K4, Cout).astype(compute_dtype)
    b2 = bias.reshape(1, Cout).astype(jnp.float32)

    m_out = th * Wd2
    m_in = th_in * Wd2

    def kernel(x_ref, w_ref, b_ref, o_ref):
        # x_ref: [1, 1, m_in, K4]   per-tile s2d rows (bf16)
        # w_ref: [4, K4, Cout]      tap weight slabs (bf16)
        # b_ref: [1, Cout]          bias (f32)
        # o_ref: [1, 1, m_out, Cout] one row-tile of output (compute dtype)
        y = b_ref[...]                                        # bias-initialized f32 acc
        for t, (ih, iw) in enumerate(((0, 0), (0, 1), (1, 0), (1, 1))):
            s = ih * Wd2 + iw                                 # static offsets
            a = x_ref[0, 0, s:s + m_out, :]                   # [m_out, K4]
            y = y + jnp.dot(a, w_ref[t], preferred_element_type=jnp.float32)
        o_ref[0, 0] = jnp.maximum(y, 0.0).astype(o_ref.dtype)

    flops = 2 * N * n_ht * m_out * (4 * K4) * Cout            # actually executed MACs
    bytes_accessed = (x3.size * x3.dtype.itemsize
                      + w4.size * w4.dtype.itemsize + b2.size * 4
                      + N * n_ht * m_out * Cout * itemsize)

    out4 = pl.pallas_call(
        kernel,
        out_shape=jax.ShapeDtypeStruct((N, n_ht, m_out, Cout), compute_dtype),
        grid_spec=pltpu.PrefetchScalarGridSpec(
            num_scalar_prefetch=0,
            grid=(N, n_ht),
            in_specs=[
                pl.BlockSpec((1, 1, m_in, K4), lambda n, t: (n, t, 0, 0)),
                pl.BlockSpec((4, K4, Cout), lambda n, t: (0, 0, 0)),
                pl.BlockSpec((1, Cout), lambda n, t: (0, 0)),
            ],
            out_specs=pl.BlockSpec((1, 1, m_out, Cout), lambda n, t: (n, t, 0, 0)),
        ),
        compiler_params=pltpu.CompilerParams(
            dimension_semantics=("parallel", "parallel"),
            vmem_limit_bytes=32 * 1024 * 1024,               # explicit; safe on v5e/v6e/v7x
        ),
        cost_estimate=pl.CostEstimate(flops=flops, transcendentals=0,
                                      bytes_accessed=bytes_accessed),
    )(x3, w4, b2)

    # Drop halo/garbage rows & columns, back to NCHW (single boundary conversion).
    out = out4.reshape(N, n_ht * th, Wd2, Cout)[:, :Hout, :Wout, :]
    return out.transpose(0, 3, 1, 2).astype(x.dtype)


def _reference(x, weight, bias):
    y = jax.lax.conv_general_dilated(
        x, weight, window_strides=(2, 2), padding="VALID",
        dimension_numbers=("NCHW", "OIHW", "NCHW"),
        precision=jax.lax.Precision.HIGHEST,
    )
    return jnp.maximum(y + bias.reshape(1, -1, 1, 1), 0.0)


if __name__ == "__main__":
    key = jax.random.PRNGKey(0)
    kx, kw, kb = jax.random.split(key, 3)

    N, Cin, H, W = 2, 4, 16, 16
    Cout = 8

    x = jax.random.normal(kx, (N, Cin, H, W), dtype=jnp.float32)
    fan_in = Cin * 3 * 3
    bound = 1.0 / (fan_in ** 0.5)
    weight = jax.random.uniform(kw, (Cout, Cin, 3, 3), jnp.float32, -bound, bound)
    bias = jax.random.uniform(kb, (Cout,), jnp.float32, -bound, bound)

    fwd = jax.jit(conv_block_forward)
    out = jax.block_until_ready(fwd(x, weight, bias))

    # Tight-ish check vs a reference fed the same bf16-rounded operands (what the MXU
    # sees; the kernel also stores in bf16), plus a loose check vs the pure-f32 conv.
    xq = x.astype(jnp.bfloat16).astype(jnp.float32)
    wq = weight.astype(jnp.bfloat16).astype(jnp.float32)
    ref_q = _reference(xq, wq, bias)
    ref_f = _reference(x, weight, bias)

    assert out.shape == ref_f.shape == (N, Cout, 7, 7), out.shape
    err_q = float(jnp.max(jnp.abs(out.astype(jnp.float32) - ref_q)))
    err_f = float(jnp.max(jnp.abs(out.astype(jnp.float32) - ref_f)))
    assert jnp.allclose(out, ref_q, atol=2e-2, rtol=2e-2), err_q
    assert jnp.allclose(out, ref_f, atol=6e-2, rtol=6e-2), err_f

    print("KERNEL_OK")
</pallas_src>

<mosaic_0001>
module attributes {stable_mosaic.version = 11 : i64} {
  func.func @kernel(%arg0: i32, %arg1: i32, %arg2: memref<1x1x72x16xbf16, #tpu.memory_space<vmem>>, %arg3: memref<4x16x8xbf16, #tpu.memory_space<vmem>>, %arg4: memref<1x8xf32, #tpu.memory_space<vmem>>, %arg5: memref<1x1x56x8xbf16, #tpu.memory_space<vmem>>) attributes {dimension_semantics = [#tpu.dimension_semantics<parallel>, #tpu.dimension_semantics<parallel>], iteration_bounds = array<i64: 2, 1>, scalar_prefetch = 0 : i64, scratch_operands = 0 : i64, tpu.core_type = #tpu.core_type<tc>, window_params = [{transform_indices = @transform_0, window_bounds = array<i64: 1, 1, 72, 16>}, {pipeline_mode = #tpu.pipeline_mode<synchronous>, transform_indices = @transform_1, window_bounds = array<i64: 4, 16, 8>}, {pipeline_mode = #tpu.pipeline_mode<synchronous>, transform_indices = @transform_2, window_bounds = array<i64: 1, 8>}, {transform_indices = @transform_3, window_bounds = array<i64: 1, 1, 56, 8>}]} {
    %c0 = arith.constant 0 : index
    %c0_0 = arith.constant 0 : index
    %0 = vector.load %arg4[%c0, %c0_0] : memref<1x8xf32, #tpu.memory_space<vmem>>, vector<1x8xf32>
    %c0_1 = arith.constant 0 : index
    %c0_2 = arith.constant 0 : index
    %c0_3 = arith.constant 0 : index
    %c0_4 = arith.constant 0 : index
    %1 = vector.load %arg2[%c0_1, %c0_2, %c0_3, %c0_4] : memref<1x1x72x16xbf16, #tpu.memory_space<vmem>>, vector<1x1x56x16xbf16>
    %2 = vector.shape_cast %1 : vector<1x1x56x16xbf16> to vector<56x16xbf16>
    %c0_5 = arith.constant 0 : index
    %c0_6 = arith.constant 0 : index
    %c0_7 = arith.constant 0 : index
    %3 = vector.load %arg3[%c0_5, %c0_6, %c0_7] : memref<4x16x8xbf16, #tpu.memory_space<vmem>>, vector<1x16x8xbf16>
    %4 = vector.shape_cast %3 : vector<1x16x8xbf16> to vector<16x8xbf16>
    %cst = arith.constant dense<0.000000e+00> : vector<56x8xf32>
    %5 = tpu.matmul %2, %4, %cst {dimension_numbers = #tpu.dot_dimension_numbers<[1], [0], [0], [1], [0, 0, 1, 1], [], []>} : vector<56x16xbf16>, vector<16x8xbf16>, vector<56x8xf32> -> vector<56x8xf32>
    %6 = vector.broadcast %0 : vector<1x8xf32> to vector<56x8xf32>
    %7 = arith.addf %6, %5 : vector<56x8xf32>
    %c0_8 = arith.constant 0 : index
    %c0_9 = arith.constant 0 : index
    %c1 = arith.constant 1 : index
    %c0_10 = arith.constant 0 : index
    %8 = vector.load %arg2[%c0_8, %c0_9, %c1, %c0_10] : memref<1x1x72x16xbf16, #tpu.memory_space<vmem>>, vector<1x1x56x16xbf16>
    %9 = vector.shape_cast %8 : vector<1x1x56x16xbf16> to vector<56x16xbf16>
    %c1_11 = arith.constant 1 : index
    %c0_12 = arith.constant 0 : index
    %c0_13 = arith.constant 0 : index
    %10 = vector.load %arg3[%c1_11, %c0_12, %c0_13] : memref<4x16x8xbf16, #tpu.memory_space<vmem>>, vector<1x16x8xbf16>
    %11 = vector.shape_cast %10 : vector<1x16x8xbf16> to vector<16x8xbf16>
    %cst_14 = arith.constant dense<0.000000e+00> : vector<56x8xf32>
    %12 = tpu.matmul %9, %11, %cst_14 {dimension_numbers = #tpu.dot_dimension_numbers<[1], [0], [0], [1], [0, 0, 1, 1], [], []>} : vector<56x16xbf16>, vector<16x8xbf16>, vector<56x8xf32> -> vector<56x8xf32>
    %13 = arith.addf %7, %12 : vector<56x8xf32>
    %c0_15 = arith.constant 0 : index
    %c0_16 = arith.constant 0 : index
    %c8 = arith.constant 8 : index
    %c0_17 = arith.constant 0 : index
    %14 = vector.load %arg2[%c0_15, %c0_16, %c8, %c0_17] : memref<1x1x72x16xbf16, #tpu.memory_space<vmem>>, vector<1x1x56x16xbf16>
    %15 = vector.shape_cast %14 : vector<1x1x56x16xbf16> to vector<56x16xbf16>
    %c2 = arith.constant 2 : index
    %c0_18 = arith.constant 0 : index
    %c0_19 = arith.constant 0 : index
    %16 = vector.load %arg3[%c2, %c0_18, %c0_19] : memref<4x16x8xbf16, #tpu.memory_space<vmem>>, vector<1x16x8xbf16>
    %17 = vector.shape_cast %16 : vector<1x16x8xbf16> to vector<16x8xbf16>
    %cst_20 = arith.constant dense<0.000000e+00> : vector<56x8xf32>
    %18 = tpu.matmul %15, %17, %cst_20 {dimension_numbers = #tpu.dot_dimension_numbers<[1], [0], [0], [1], [0, 0, 1, 1], [], []>} : vector<56x16xbf16>, vector<16x8xbf16>, vector<56x8xf32> -> vector<56x8xf32>
    %19 = arith.addf %13, %18 : vector<56x8xf32>
    %c0_21 = arith.constant 0 : index
    %c0_22 = arith.constant 0 : index
    %c9 = arith.constant 9 : index
    %c0_23 = arith.constant 0 : index
    %20 = vector.load %arg2[%c0_21, %c0_22, %c9, %c0_23] : memref<1x1x72x16xbf16, #tpu.memory_space<vmem>>, vector<1x1x56x16xbf16>
    %21 = vector.shape_cast %20 : vector<1x1x56x16xbf16> to vector<56x16xbf16>
    %c3 = arith.constant 3 : index
    %c0_24 = arith.constant 0 : index
    %c0_25 = arith.constant 0 : index
    %22 = vector.load %arg3[%c3, %c0_24, %c0_25] : memref<4x16x8xbf16, #tpu.memory_space<vmem>>, vector<1x16x8xbf16>
    %23 = vector.shape_cast %22 : vector<1x16x8xbf16> to vector<16x8xbf16>
    %cst_26 = arith.constant dense<0.000000e+00> : vector<56x8xf32>
    %24 = tpu.matmul %21, %23, %cst_26 {dimension_numbers = #tpu.dot_dimension_numbers<[1], [0], [0], [1], [0, 0, 1, 1], [], []>} : vector<56x16xbf16>, vector<16x8xbf16>, vector<56x8xf32> -> vector<56x8xf32>
    %25 = arith.addf %19, %24 : vector<56x8xf32>
    %cst_27 = arith.constant 0.000000e+00 : f32
    %26 = vector.broadcast %cst_27 : f32 to vector<56x8xf32>
    %27 = arith.maximumf %25, %26 : vector<56x8xf32>
    %28 = arith.truncf %27 : vector<56x8xf32> to vector<56x8xbf16>
    %c0_28 = arith.constant 0 : index
    %c0_29 = arith.constant 0 : index
    %c0_30 = arith.constant 0 : index
    %c0_31 = arith.constant 0 : index
    %29 = vector.load %arg5[%c0_28, %c0_29, %c0_30, %c0_31] : memref<1x1x56x8xbf16, #tpu.memory_space<vmem>>, vector<1x1x56x8xbf16>
    %30 = vector.shape_cast %29 : vector<1x1x56x8xbf16> to vector<56x8xbf16>
    %31 = vector.shape_cast %28 : vector<56x8xbf16> to vector<1x1x56x8xbf16>
    tpu.vector_store %arg5[%c0_28, %c0_29, %c0_30, %c0_31], %31 {strides = array<i32>} : memref<1x1x56x8xbf16, #tpu.memory_space<vmem>>, vector<1x1x56x8xbf16>,
    return
  }
  func.func @transform_0(%arg0: i32, %arg1: i32) -> (i32, i32, i32, i32) {
    %c0_i32 = arith.constant 0 : i32
    %c0_i32_0 = arith.constant 0 : i32
    %c0_i32_1 = arith.constant 0 : i32
    return %arg0, %arg1, %c0_i32, %c0_i32_0 : i32, i32, i32, i32
  }
  func.func @transform_1(%arg0: i32, %arg1: i32) -> (i32, i32, i32) {
    %c0_i32 = arith.constant 0 : i32
    %c0_i32_0 = arith.constant 0 : i32
    %c0_i32_1 = arith.constant 0 : i32
    %c0_i32_2 = arith.constant 0 : i32
    return %c0_i32, %c0_i32_0, %c0_i32_1 : i32, i32, i32
  }
  func.func @transform_2(%arg0: i32, %arg1: i32) -> (i32, i32) {
    %c0_i32 = arith.constant 0 : i32
    %c0_i32_0 = arith.constant 0 : i32
    %c0_i32_1 = arith.constant 0 : i32
    return %c0_i32, %c0_i32_0 : i32, i32
  }
  func.func @transform_3(%arg0: i32, %arg1: i32) -> (i32, i32, i32, i32) {
    %c0_i32 = arith.constant 0 : i32
    %c0_i32_0 = arith.constant 0 : i32
    %c0_i32_1 = arith.constant 0 : i32
    return %arg0, %arg1, %c0_i32, %c0_i32_0 : i32, i32, i32, i32
  }
}

</mosaic_0001>

<llo_original>
// kernel: conv_block_forward.1
$region0: #{conv_block_forward.1}
  #allocation0 [shape = 'u32[]', space=smem, size = 0x4, offset = 0x4, fixed_abs, tag = 'smem constant byte address 0x4 - core index']
  #allocation1 [shape = 'u32[144,128]{1,0:T(1,128)}', space=vmem, size = 0x12000, scoped, tag = 'internal scratch']
  %s0 = inlined_call_operand.vmem [shape: bf16[2,1,72,16], index: 0, kind: input, shape index: {}]
  %s1 = inlined_call_operand.vmem [shape: bf16[4,16,8], index: 1, kind: input, shape index: {}]
  %s2 = inlined_call_operand.vmem [shape: f32[1,8], index: 2, kind: input, shape index: {}]
  %s3 = inlined_call_operand.vmem [shape: bf16[2,1,56,8], index: 3, kind: output, shape index: {}]
  %s4 = sld [smem:[#allocation0]]
  $region45: #{conv_block_forward.1} parent=0
    _
  %s6 = ssub.s32 1, %s4
  %s7 = scalar_select 0, %s6, %s4
  loop: start=0, step=1, limit=4
  $region2: #{conv_block_forward.1} parent=0 // loop_pre_header
    _
  $region3: #{conv_block_forward.1} parent=0 // loop_header
    %s9 = sphi 0, %s13
    %p10 = scmp.ge.s32.totalorder %s9, 4
    %s16 = sphi 0, %s28
    %s17 = sphi 0, %s24
    %s18 = sphi 0, %s16
    %s19 = sphi 0, %s17
    %s20 = sphi 0, %s18
    %s21 = sphi 0, %s19
    %s33 = sphi 0, %s35
    %s36 = sphi 0, %s33
    %s37 = sphi 0, %s36
    %s53 = sphi 0, %s37
    %s57 = sphi 0, %s57
    %s59 = sphi 0, %s57
    %s60 = sphi 0, %s59
    %s74 = sphi 0, %s60
    %s78 = sphi 0, %s78
    %s80 = sphi 0, %s78
    %s81 = sphi 0, %s80
    %s95 = sphi 0, %s81
    %s103 = sphi 0, %s105
    %s106 = sphi 0, %s103
    %s107 = sphi 0, %s106
    %s123 = sphi 0, %s107
  $region4: #{conv_block_forward.1} parent=0 // loop_header_branch
    %12 = sbr.rel (%p10) target = $region8
  $region5: #{conv_block_forward.1} parent=0 // loop_body
    %s14 = ssub.s32 %s9, 1
    %s15 = ssub.s32 %s9, 2
    %s22 = sadd.s32 1, %s17
    %p23 = scmp.ge.s32.totalorder %s22, 1
    %s24 = scalar_select %p23, 0, %s22
    %s25 = sadd.s32 1, %s16
    %s26 = scalar_select %p23, %s25, %s16
    %p27 = scmp.ge.s32.totalorder %s26, 2
    %s28 = scalar_select %p27, 0, %s26
    %s29 = ssub.s32 %s16, %s28
    %s30 = ssub.s32 %s17, %s24
    %s31 = sor.u32 %s29, %s30
    %p32 = scmp.eq.s32.totalorder %s31, 0
    %s34 = sadd.s32 %s33, 1
    %s35 = scalar_select %p32, %s33, %s34
    %p38 = pneg %p32
    %p39 = scmp.eq.s32.totalorder %s9, 1
    %p40 = por %p38, %p39
    %p41 = scmp.ne.s32.totalorder %s33, %s36
    %p42 = scmp.eq.s32.totalorder %s9, 0
    %p43 = por %p41, %p42
    %p44 = scmp.ne.s32.totalorder %s33, %s36
    %p45 = scmp.eq.s32.totalorder %s14, 1
    %p46 = por %p44, %p45
    %p47 = scmp.ne.s32.totalorder %s36, %s37
    %p48 = scmp.eq.s32.totalorder %s14, 0
    %p49 = por %p47, %p48
    %p50 = scmp.ne.s32.totalorder %s36, %s37
    %p51 = scmp.eq.s32.totalorder %s15, 1
    %p52 = por %p50, %p51
    %p54 = scmp.ne.s32.totalorder %s37, %s53
    %p55 = scmp.eq.s32.totalorder %s15, 0
    %p56 = por %p54, %p55
    %s58 = sadd.s32 %s57, 1
    %p61 = scmp.eq.s32.totalorder %s9, 1
    %p62 = scmp.ne.s32.totalorder %s57, %s59
    %p63 = scmp.eq.s32.totalorder %s9, 0
    %p64 = por %p62, %p63
    %p65 = scmp.ne.s32.totalorder %s57, %s59
    %p66 = scmp.eq.s32.totalorder %s14, 1
    %p67 = por %p65, %p66
    %p68 = scmp.ne.s32.totalorder %s59, %s60
    %p69 = scmp.eq.s32.totalorder %s14, 0
    %p70 = por %p68, %p69
    %p71 = scmp.ne.s32.totalorder %s59, %s60
    %p72 = scmp.eq.s32.totalorder %s15, 1
    %p73 = por %p71, %p72
    %p75 = scmp.ne.s32.totalorder %s60, %s74
    %p76 = scmp.eq.s32.totalorder %s15, 0
    %p77 = por %p75, %p76
    %s79 = sadd.s32 %s78, 1
    %p82 = scmp.eq.s32.totalorder %s9, 1
    %p83 = scmp.ne.s32.totalorder %s78, %s80
    %p84 = scmp.eq.s32.totalorder %s9, 0
    %p85 = por %p83, %p84
    %p86 = scmp.ne.s32.totalorder %s78, %s80
    %p87 = scmp.eq.s32.totalorder %s14, 1
    %p88 = por %p86, %p87
    %p89 = scmp.ne.s32.totalorder %s80, %s81
    %p90 = scmp.eq.s32.totalorder %s14, 0
    %p91 = por %p89, %p90
    %p92 = scmp.ne.s32.totalorder %s80, %s81
    %p93 = scmp.eq.s32.totalorder %s15, 1
    %p94 = por %p92, %p93
    %p96 = scmp.ne.s32.totalorder %s81, %s95
    %p97 = scmp.eq.s32.totalorder %s15, 0
    %p98 = por %p96, %p97
    %s99 = ssub.s32 %s16, %s28
    %s100 = ssub.s32 %s17, %s24
    %s101 = sor.u32 %s99, %s100
    %p102 = scmp.eq.s32.totalorder %s101, 0
    %s104 = sadd.s32 %s103, 1
    %s105 = scalar_select %p102, %s103, %s104
    %p108 = pneg %p102
    %p109 = scmp.eq.s32.totalorder %s9, 1
    %p110 = por %p108, %p109
    %p111 = scmp.ne.s32.totalorder %s103, %s106
    %p112 = scmp.eq.s32.totalorder %s9, 0
    %p113 = por %p111, %p112
    %p114 = scmp.ne.s32.totalorder %s103, %s106
    %p115 = scmp.eq.s32.totalorder %s14, 1
    %p116 = por %p114, %p115
    %p117 = scmp.ne.s32.totalorder %s106, %s107
    %p118 = scmp.eq.s32.totalorder %s14, 0
    %p119 = por %p117, %p118
    %p120 = scmp.ne.s32.totalorder %s106, %s107
    %p121 = scmp.eq.s32.totalorder %s15, 1
    %p122 = por %p120, %p121
    %p124 = scmp.ne.s32.totalorder %s107, %s123
    %p125 = scmp.eq.s32.totalorder %s15, 0
    %p126 = por %p124, %p125
    %p127 = scmp.le.s32.totalorder 1, %s9
    %p128 = scmp.lt.s32.totalorder %s9, 3
    %p129 = pnand %p127, %p128
    %p130 = pneg %p129
    // Predicated region
    $region9: #{conv_block_forward.1} parent=5 // pred_check
      _
    $region10: #{conv_block_forward.1} parent=5 // pred_check_branch
      %132 = sbr.rel (%p129) target = $region12
    $region11: #{conv_block_forward.1} parent=5 // pred_region
      %s133 = ssub.s32 %s9, 1
      // Predicated region
      $region13: #{conv_block_forward.1} parent=11 // pred_check
        %p134 = pneg %p70
      $region14: #{conv_block_forward.1} parent=11 // pred_check_branch
        %136 = sbr.rel (%p134) target = $region16
      $region15: #{conv_block_forward.1} parent=11 // pred_region
        _
      $region16: #{conv_block_forward.1} parent=11 // pred_fallthru
        _
      // Predicated region
      $region17: #{conv_block_forward.1} parent=11 // pred_check
        %p137 = pneg %p91
      $region18: #{conv_block_forward.1} parent=11 // pred_check_branch
        %139 = sbr.rel (%p137) target = $region20
      $region19: #{conv_block_forward.1} parent=11 // pred_region
        _
      $region20: #{conv_block_forward.1} parent=11 // pred_fallthru
        _
    $region12: #{conv_block_forward.1} parent=5 // pred_fallthru
      _
    %p140 = scmp.lt.s32.totalorder %s9, 2
    // Predicated region
    $region21: #{conv_block_forward.1} parent=5 // pred_check
      %p141 = pneg %p140
    $region22: #{conv_block_forward.1} parent=5 // pred_check_branch
      %143 = sbr.rel (%p141) target = $region24
    $region23: #{conv_block_forward.1} parent=5 // pred_region
      // Predicated region
      $region25: #{conv_block_forward.1} parent=23 // pred_check
        %p144 = pneg %p43
      $region26: #{conv_block_forward.1} parent=23 // pred_check_branch
        %146 = sbr.rel (%p144) target = $region28
      $region27: #{conv_block_forward.1} parent=23 // pred_region
        %p147 = scmp.lt.s32.totalorder %s16, 1
        %s148 = scalar_select %p147, %s16, 1
        %p149 = scmp.lt.s32.totalorder %s17, 0
        %s150 = scalar_select %p149, %s17, 0
        %s151 = smul.addr %s150, 9
        %s152 = smul.addr %s148, 9
        %s153 = sadd.s32 %s151, %s152
        %s154 = smul.addr %s153, 4
        %s155 = scalar_lea.vmem %s0, %s154
      $region28: #{conv_block_forward.1} parent=23 // pred_fallthru
        _
    $region24: #{conv_block_forward.1} parent=5 // pred_fallthru
      _
    %p156 = scmp.le.s32.totalorder 1, %s9
    %p157 = scmp.lt.s32.totalorder %s9, 3
    %p158 = pnand %p156, %p157
    %p159 = pneg %p158
    // Predicated region
    $region29: #{conv_block_forward.1} parent=5 // pred_check
      _
    $region30: #{conv_block_forward.1} parent=5 // pred_check_branch
      %161 = sbr.rel (%p158) target = $region32
    $region31: #{conv_block_forward.1} parent=5 // pred_region
      %s162 = ssub.s32 %s9, 1
      %p163 = scmp.lt.s32.totalorder %s18, 1
      %s164 = scalar_select %p163, %s18, 1
      %p165 = scmp.lt.s32.totalorder %s19, 0
      %s166 = scalar_select %p165, %s19, 0
      %s167 = smul.addr %s166, 9
      %s168 = smul.addr %s164, 9
      %s169 = sadd.s32 %s167, %s168
      %s170 = smul.addr %s169, 4
      %s171 = scalar_lea.vmem %s0, %s170
      %p172 = pneg %p49
      %p173 = pneg %p46
      %p174 = pneg %p70
      %p175 = pneg %p67
      %p176 = pneg %p91
      %p177 = pneg %p88
      %p178 = pneg %p119
      %p179 = pneg %p116
      %p180 = scmp.lt.s32.totalorder %s18, 1
      %s181 = scalar_select %p180, %s18, 1
      %p182 = scmp.lt.s32.totalorder %s19, 0
      %s183 = scalar_select %p182, %s19, 0
      %s184 = smul.addr %s183, 7
      %s185 = smul.addr %s181, 7
      %s186 = sadd.s32 %s184, %s185
      %s187 = smul.addr %s186, 4
      %s188 = scalar_lea.vmem %s3, %s187
      %p189 = scmp.lt.s32.totalorder %s18, 1
      %s190 = scalar_select %p189, %s18, 1
      %p191 = scmp.lt.s32.totalorder %s19, 0
      %s192 = scalar_select %p191, %s19, 0
      %s193 = smul.addr %s192, 9
      %s194 = smul.addr %s190, 9
      %s195 = sadd.s32 %s193, %s194
      %s196 = smul.addr %s195, 4
      %s197 = scalar_lea.vmem %s0, %s196
      %p198 = scmp.lt.s32.totalorder %s18, 1
      %s199 = scalar_select %p198, %s18, 1
      %p200 = scmp.lt.s32.totalorder %s19, 0
      %s201 = scalar_select %p200, %s19, 0
      %s202 = smul.addr %s201, 7
      %s203 = smul.addr %s199, 7
      %s204 = sadd.s32 %s202, %s203
      %s205 = smul.addr %s204, 4
      %s206 = scalar_lea.vmem %s3, %s205
      %v208 = vld [vmem:[%s2] sm:$0x1]
      %v209 = vld [vmem:[%s197] sm:$0xf]
      %v210 = vld [vmem:[%s197 + $0x4] sm:$0xf]
      %v211 = vld [vmem:[%s197 + $0x8] sm:$0xf]
      %v212 = vld [vmem:[%s197 + $0xc] sm:$0xf]
      %v213 = vld [vmem:[%s197 + $0x10] sm:$0xf]
      %v214 = vld [vmem:[%s197 + $0x14] sm:$0xf]
      %v215 = vld [vmem:[%s197 + $0x18] sm:$0xf]
      %v216 = vld [vmem:[%s1] sm:$0xf]
      %v217 = vld [vmem:[%s1 + $0x4] sm:$0xf]
      %v225 = vunpack.c.l.b16 %v209
      %v226 = vunpack.c.l.b16 %v210
      %v227 = vunpack.c.l.b16 %v211
      %v228 = vunpack.c.l.b16 %v212
      %v229 = vunpack.c.l.b16 %v213
      %v230 = vunpack.c.l.b16 %v214
      %v231 = vunpack.c.l.b16 %v215
      %v232 = vpack.c.b16 %v226, %v225
      %v233 = vpack.c.b16 %v228, %v227
      %v234 = vpack.c.b16 %v230, %v229
      %v235 = vpack.c.b16 %v231, %v231
      %v238 = vunpack.c.l.b16 %v216
      %v239 = vunpack.c.l.b16 %v217
      %v240 = vpack.c.b16 %v239, %v238
      %vm242 = vcmask 130048
      %v244 = vsel %vm242, %v232, 0
      %v247 = vsel %vm242, %v233, 0
      %v250 = vsel %vm242, %v234, 0
      %v253 = vsel %vm242, %v235, 0
      %255 = vmatprep.subr.bf16.mxu0 0
      %256 = vmatpush1.bf16.msra.mxu0 %v240
      %257 = vmatprep.subr.bf16.mxu0 0
      %258 = vmatpush1.bf16.msra.mxu0 0
      %259 = vmatprep.subr.bf16.mxu0 0
      %260 = vmatpush1.bf16.msra.mxu0 0
      %261 = vmatprep.subr.bf16.mxu0 0
      %262 = vmatpush1.bf16.msra.mxu0 0
      %263 = vmatprep.subr.bf16.mxu0 0
      %264 = vmatpush1.bf16.msra.mxu0 0
      %265 = vmatprep.subr.bf16.mxu0 0
      %266 = vmatpush1.bf16.msra.mxu0 0
      %267 = vmatprep.subr.bf16.mxu0 0
      %268 = vmatpush1.bf16.msra.mxu0 0
      %269 = vmatprep.subr.bf16.mxu0 0
      %270 = vmatpush1.bf16.msra.mxu0 0
      %271 = vmatprep.subr.bf16.mxu0 0
      %272 = vmatpush1.bf16.msra.mxu0 0
      %273 = vmatprep.subr.bf16.mxu0 0
      %274 = vmatpush1.bf16.msra.mxu0 0
      %275 = vmatprep.subr.bf16.mxu0 0
      %276 = vmatpush1.bf16.msra.mxu0 0
      %277 = vmatprep.subr.bf16.mxu0 0
      %278 = vmatpush1.bf16.msra.mxu0 0
      %279 = vmatprep.subr.bf16.mxu0 0
      %280 = vmatpush1.bf16.msra.mxu0 0
      %281 = vmatprep.subr.bf16.mxu0 0
      %282 = vmatpush1.bf16.msra.mxu0 0
      %283 = vmatprep.subr.bf16.mxu0 0
      %284 = vmatpush1.bf16.msra.mxu0 0
      %285 = vmatprep.subr.bf16.mxu0 0
      %286 = vmatpush1.bf16.msra.mxu0 0
      %287 = vmatprep.mubr.bf16.mxu0 0
      %288 = vmatmul.mubr.bf16.gmra.mrb[0].mxu0 %v244
      %v289 = vpop.f32.mrb[0].mxu0
      %v290 = vadd.f32 0.0, %v289
      %v291 = vpop.f32.mrb[0].mxu0
      %v292 = vpop.f32.mrb[0].mxu0
      %v293 = vadd.f32 0.0, %v292
      %v294 = vpop.f32.mrb[0].mxu0
      %295 = vmatprep.mubr.bf16.mxu0 0
      %296 = vmatmul.mubr.bf16.gmra.mrb[0].mxu0 %v247
      %v297 = vpop.f32.mrb[0].mxu0
      %v298 = vadd.f32 0.0, %v297
      %v299 = vpop.f32.mrb[0].mxu0
      %v300 = vpop.f32.mrb[0].mxu0
      %v301 = vadd.f32 0.0, %v300
      %v302 = vpop.f32.mrb[0].mxu0
      %303 = vmatprep.mubr.bf16.mxu0 0
      %304 = vmatmul.mubr.bf16.gmra.mrb[0].mxu0 %v250
      %v305 = vpop.f32.mrb[0].mxu0
      %v306 = vadd.f32 0.0, %v305
      %v307 = vpop.f32.mrb[0].mxu0
      %v308 = vpop.f32.mrb[0].mxu0
      %v309 = vadd.f32 0.0, %v308
      %v310 = vpop.f32.mrb[0].mxu0
      %311 = vmatprep.mubr.bf16.mxu0 0
      %312 = vmatmul.mubr.bf16.gmra.mrb[0].mxu0 %v253
      %v313 = vpop.f32.mrb[0].mxu0
      %v314 = vadd.f32 0.0, %v313
      %v315 = vpop.f32.mrb[0].mxu0
      %v316 = vpop.f32.mrb[0].mxu0
      %v317 = vpop.f32.mrb[0].mxu0
      %318 = vdwg.mxu0
      %v320 = vlaneseq
      %v321 = vshrl.u32 %v320, 7
      %v322 = vsub.s32 0, %v321
      %v323 = vrot.slane %v208, %v322
      %v325 = vadd.f32 %v323, %v290
      %v326 = vadd.f32 %v323, %v293
      %v327 = vadd.f32 %v323, %v298
      %v328 = vadd.f32 %v323, %v301
      %v329 = vadd.f32 %v323, %v306
      %v330 = vadd.f32 %v323, %v309
      %v331 = vadd.f32 %v323, %v314
      %v332 = vld [vmem:[%s197] sm:$0xf]
      %v333 = vld [vmem:[%s197 + $0x4] sm:$0xf]
      %v334 = vld [vmem:[%s197 + $0x8] sm:$0xf]
      %v335 = vld [vmem:[%s197 + $0xc] sm:$0xf]
      %v336 = vld [vmem:[%s197 + $0x10] sm:$0xf]
      %v337 = vld [vmem:[%s197 + $0x14] sm:$0xf]
      %v338 = vld [vmem:[%s197 + $0x18] sm:$0xf]
      %v339 = vld [vmem:[%s197 + $0x1c] sm:$0x1]
      %s340 = scalar_lea.vmem %s1, 8
      %v341 = vld [vmem:[%s340] sm:$0xf]
      %v342 = vld [vmem:[%s340 + $0x4] sm:$0xf]
      %v351 = vunpack.c.l.b16 %v332
      %v352 = vunpack.c.l.b16 %v333
      %v353 = vunpack.c.l.b16 %v334
      %v354 = vunpack.c.l.b16 %v335
      %v355 = vunpack.c.l.b16 %v336
      %v356 = vunpack.c.l.b16 %v337
      %v357 = vunpack.c.l.b16 %v338
      %v358 = vunpack.c.l.b16 %v339
      %v359 = vpack.c.b16 %v352, %v351
      %v360 = vpack.c.b16 %v354, %v353
      %v361 = vpack.c.b16 %v356, %v355
      %v362 = vpack.c.b16 %v358, %v357
      %vm363 = vsmask.f32 7424
      %v365 = vshrl.u32 %v359, 16
      %v367 = vshll.u32 %v359, 16
      %v369 = vrot.slane %v367, 1
      %v370 = vor.u32 %v365, %v369
      %v372 = vshll.u32 %v360, 16
      %v374 = vrot.slane %v372, 1
      %v375 = vsel %vm363, %v370, %v374
      %v376 = vshrl.u32 %v360, 16
      %v378 = vor.u32 %v376, %v374
      %v380 = vshll.u32 %v361, 16
      %v382 = vrot.slane %v380, 1
      %v383 = vsel %vm363, %v378, %v382
      %v384 = vshrl.u32 %v361, 16
      %v386 = vor.u32 %v384, %v382
      %v388 = vshll.u32 %v362, 16
      %v390 = vrot.slane %v388, 1
      %v391 = vsel %vm363, %v386, %v390
      %v392 = vshrl.u32 %v362, 16
      %v394 = vor.u32 %v392, %v390
      %v397 = vunpack.c.l.b16 %v341
      %v398 = vunpack.c.l.b16 %v342
      %v399 = vpack.c.b16 %v398, %v397
      %v402 = vsel %vm242, %v375, 0
      %v405 = vsel %vm242, %v383, 0
      %v408 = vsel %vm242, %v391, 0
      %v411 = vsel %vm242, %v394, 0
      %413 = vmatprep.subr.bf16.mxu0 0
      %414 = vmatpush1.bf16.msra.mxu0 %v399
      %415 = vmatprep.subr.bf16.mxu0 0
      %416 = vmatpush1.bf16.msra.mxu0 0
      %417 = vmatprep.subr.bf16.mxu0 0
      %418 = vmatpush1.bf16.msra.mxu0 0
      %419 = vmatprep.subr.bf16.mxu0 0
      %420 = vmatpush1.bf16.msra.mxu0 0
      %421 = vmatprep.subr.bf16.mxu0 0
      %422 = vmatpush1.bf16.msra.mxu0 0
      %423 = vmatprep.subr.bf16.mxu0 0
      %424 = vmatpush1.bf16.msra.mxu0 0
      %425 = vmatprep.subr.bf16.mxu0 0
      %426 = vmatpush1.bf16.msra.mxu0 0
      %427 = vmatprep.subr.bf16.mxu0 0
      %428 = vmatpush1.bf16.msra.mxu0 0
      %429 = vmatprep.subr.bf16.mxu0 0
      %430 = vmatpush1.bf16.msra.mxu0 0
      %431 = vmatprep.subr.bf16.mxu0 0
      %432 = vmatpush1.bf16.msra.mxu0 0
      %433 = vmatprep.subr.bf16.mxu0 0
      %434 = vmatpush1.bf16.msra.mxu0 0
      %435 = vmatprep.subr.bf16.mxu0 0
      %436 = vmatpush1.bf16.msra.mxu0 0
      %437 = vmatprep.subr.bf16.mxu0 0
      %438 = vmatpush1.bf16.msra.mxu0 0
      %439 = vmatprep.subr.bf16.mxu0 0
      %440 = vmatpush1.bf16.msra.mxu0 0
      %441 = vmatprep.subr.bf16.mxu0 0
      %442 = vmatpush1.bf16.msra.mxu0 0
      %443 = vmatprep.subr.bf16.mxu0 0
      %444 = vmatpush1.bf16.msra.mxu0 0
      %445 = vmatprep.mubr.bf16.mxu0 0
      %446 = vmatmul.mubr.bf16.gmra.mrb[0].mxu0 %v402
      %v447 = vpop.f32.mrb[0].mxu0
      %v448 = vadd.f32 0.0, %v447
      %v449 = vpop.f32.mrb[0].mxu0
      %v450 = vpop.f32.mrb[0].mxu0
      %v451 = vadd.f32 0.0, %v450
      %v452 = vpop.f32.mrb[0].mxu0
      %453 = vmatprep.mubr.bf16.mxu0 0
      %454 = vmatmul.mubr.bf16.gmra.mrb[0].mxu0 %v405
      %v455 = vpop.f32.mrb[0].mxu0
      %v456 = vadd.f32 0.0, %v455
      %v457 = vpop.f32.mrb[0].mxu0
      %v458 = vpop.f32.mrb[0].mxu0
      %v459 = vadd.f32 0.0, %v458
      %v460 = vpop.f32.mrb[0].mxu0
      %461 = vmatprep.mubr.bf16.mxu0 0
      %462 = vmatmul.mubr.bf16.gmra.mrb[0].mxu0 %v408
      %v463 = vpop.f32.mrb[0].mxu0
      %v464 = vadd.f32 0.0, %v463
      %v465 = vpop.f32.mrb[0].mxu0
      %v466 = vpop.f32.mrb[0].mxu0
      %v467 = vadd.f32 0.0, %v466
      %v468 = vpop.f32.mrb[0].mxu0
      %469 = vmatprep.mubr.bf16.mxu0 0
      %470 = vmatmul.mubr.bf16.gmra.mrb[0].mxu0 %v411
      %v471 = vpop.f32.mrb[0].mxu0
      %v472 = vadd.f32 0.0, %v471
      %v473 = vpop.f32.mrb[0].mxu0
      %v474 = vpop.f32.mrb[0].mxu0
      %v475 = vpop.f32.mrb[0].mxu0
      %476 = vdwg.mxu0
      %v477 = vadd.f32 %v325, %v448
      %v478 = vadd.f32 %v326, %v451
      %v479 = vadd.f32 %v327, %v456
      %v480 = vadd.f32 %v328, %v459
      %v481 = vadd.f32 %v329, %v464
      %v482 = vadd.f32 %v330, %v467
      %v483 = vadd.f32 %v331, %v472
      %v484 = vld [vmem:[%s197 + $0x1c] sm:$0xf]
      %s485 = scalar_lea.vmem %s1, 16
      %v486 = vld [vmem:[%s485] sm:$0xf]
      %v487 = vld [vmem:[%s485 + $0x4] sm:$0xf]
      %v489 = vunpack.c.l.b16 %v484
      %v490 = vpack.c.b16 %v353, %v352
      %v491 = vpack.c.b16 %v355, %v354
      %v492 = vpack.c.b16 %v357, %v356
      %v493 = vpack.c.b16 %v489, %v489
      %v496 = vunpack.c.l.b16 %v486
      %v497 = vunpack.c.l.b16 %v487
      %v498 = vpack.c.b16 %v497, %v496
      %v501 = vsel %vm242, %v490, 0
      %v504 = vsel %vm242, %v491, 0
      %v507 = vsel %vm242, %v492, 0
      %v510 = vsel %vm242, %v493, 0
      %512 = vmatprep.subr.bf16.mxu0 0
      %513 = vmatpush1.bf16.msra.mxu0 %v498
      %514 = vmatprep.subr.bf16.mxu0 0
      %515 = vmatpush1.bf16.msra.mxu0 0
      %516 = vmatprep.subr.bf16.mxu0 0
      %517 = vmatpush1.bf16.msra.mxu0 0
      %518 = vmatprep.subr.bf16.mxu0 0
      %519 = vmatpush1.bf16.msra.mxu0 0
      %520 = vmatprep.subr.bf16.mxu0 0
      %521 = vmatpush1.bf16.msra.mxu0 0
      %522 = vmatprep.subr.bf16.mxu0 0
      %523 = vmatpush1.bf16.msra.mxu0 0
      %524 = vmatprep.subr.bf16.mxu0 0
      %525 = vmatpush1.bf16.msra.mxu0 0
      %526 = vmatprep.subr.bf16.mxu0 0
      %527 = vmatpush1.bf16.msra.mxu0 0
      %528 = vmatprep.subr.bf16.mxu0 0
      %529 = vmatpush1.bf16.msra.mxu0 0
      %530 = vmatprep.subr.bf16.mxu0 0
      %531 = vmatpush1.bf16.msra.mxu0 0
      %532 = vmatprep.subr.bf16.mxu0 0
      %533 = vmatpush1.bf16.msra.mxu0 0
      %534 = vmatprep.subr.bf16.mxu0 0
      %535 = vmatpush1.bf16.msra.mxu0 0
      %536 = vmatprep.subr.bf16.mxu0 0
      %537 = vmatpush1.bf16.msra.mxu0 0
      %538 = vmatprep.subr.bf16.mxu0 0
      %539 = vmatpush1.bf16.msra.mxu0 0
      %540 = vmatprep.subr.bf16.mxu0 0
      %541 = vmatpush1.bf16.msra.mxu0 0
      %542 = vmatprep.subr.bf16.mxu0 0
      %543 = vmatpush1.bf16.msra.mxu0 0
      %544 = vmatprep.mubr.bf16.mxu0 0
      %545 = vmatmul.mubr.bf16.gmra.mrb[0].mxu0 %v501
      %v546 = vpop.f32.mrb[0].mxu0
      %v547 = vadd.f32 0.0, %v546
      %v548 = vpop.f32.mrb[0].mxu0
      %v549 = vpop.f32.mrb[0].mxu0
      %v550 = vadd.f32 0.0, %v549
      %v551 = vpop.f32.mrb[0].mxu0
      %552 = vmatprep.mubr.bf16.mxu0 0
      %553 = vmatmul.mubr.bf16.gmra.mrb[0].mxu0 %v504
      %v554 = vpop.f32.mrb[0].mxu0
      %v555 = vadd.f32 0.0, %v554
      %v556 = vpop.f32.mrb[0].mxu0
      %v557 = vpop.f32.mrb[0].mxu0
      %v558 = vadd.f32 0.0, %v557
      %v559 = vpop.f32.mrb[0].mxu0
      %560 = vmatprep.mubr.bf16.mxu0 0
      %561 = vmatmul.mubr.bf16.gmra.mrb[0].mxu0 %v507
      %v562 = vpop.f32.mrb[0].mxu0
      %v563 = vadd.f32 0.0, %v562
      %v564 = vpop.f32.mrb[0].mxu0
      %v565 = vpop.f32.mrb[0].mxu0
      %v566 = vadd.f32 0.0, %v565
      %v567 = vpop.f32.mrb[0].mxu0
      %568 = vmatprep.mubr.bf16.mxu0 0
      %569 = vmatmul.mubr.bf16.gmra.mrb[0].mxu0 %v510
      %v570 = vpop.f32.mrb[0].mxu0
      %v571 = vadd.f32 0.0, %v570
      %v572 = vpop.f32.mrb[0].mxu0
      %v573 = vpop.f32.mrb[0].mxu0
      %v574 = vpop.f32.mrb[0].mxu0
      %575 = vdwg.mxu0
      %v576 = vadd.f32 %v477, %v547
      %v577 = vadd.f32 %v478, %v550
      %v578 = vadd.f32 %v479, %v555
      %v579 = vadd.f32 %v480, %v558
      %v580 = vadd.f32 %v481, %v563
      %v581 = vadd.f32 %v482, %v566
      %v582 = vadd.f32 %v483, %v571
      %v583 = vld [vmem:[%s197 + $0x4] sm:$0xf]
      %v584 = vld [vmem:[%s197 + $0x8] sm:$0xf]
      %v585 = vld [vmem:[%s197 + $0xc] sm:$0xf]
      %v586 = vld [vmem:[%s197 + $0x10] sm:$0xf]
      %v587 = vld [vmem:[%s197 + $0x14] sm:$0xf]
      %v588 = vld [vmem:[%s197 + $0x18] sm:$0xf]
      %v589 = vld [vmem:[%s197 + $0x1c] sm:$0xf]
      %v590 = vld [vmem:[%s197 + $0x20] sm:$0x1]
      %s591 = scalar_lea.vmem %s1, 24
      %v592 = vld [vmem:[%s591] sm:$0xf]
      %v593 = vld [vmem:[%s591 + $0x4] sm:$0xf]
      %v602 = vunpack.c.l.b16 %v583
      %v603 = vunpack.c.l.b16 %v584
      %v604 = vunpack.c.l.b16 %v585
      %v605 = vunpack.c.l.b16 %v586
      %v606 = vunpack.c.l.b16 %v587
      %v607 = vunpack.c.l.b16 %v588
      %v608 = vunpack.c.l.b16 %v589
      %v609 = vunpack.c.l.b16 %v590
      %v610 = vpack.c.b16 %v603, %v602
      %v611 = vpack.c.b16 %v605, %v604
      %v612 = vpack.c.b16 %v607, %v606
      %v613 = vpack.c.b16 %v609, %v608
      %v615 = vshrl.u32 %v610, 16
      %v617 = vshll.u32 %v610, 16
      %v619 = vrot.slane %v617, 1
      %v620 = vor.u32 %v615, %v619
      %v622 = vshll.u32 %v611, 16
      %v624 = vrot.slane %v622, 1
      %v625 = vsel %vm363, %v620, %v624
      %v626 = vshrl.u32 %v611, 16
      %v628 = vor.u32 %v626, %v624
      %v630 = vshll.u32 %v612, 16
      %v632 = vrot.slane %v630, 1
      %v633 = vsel %vm363, %v628, %v632
      %v634 = vshrl.u32 %v612, 16
      %v636 = vor.u32 %v634, %v632
      %v638 = vshll.u32 %v613, 16
      %v640 = vrot.slane %v638, 1
      %v641 = vsel %vm363, %v636, %v640
      %v642 = vshrl.u32 %v613, 16
      %v644 = vor.u32 %v642, %v640
      %v647 = vunpack.c.l.b16 %v592
      %v648 = vunpack.c.l.b16 %v593
      %v649 = vpack.c.b16 %v648, %v647
      %v652 = vsel %vm242, %v625, 0
      %v655 = vsel %vm242, %v633, 0
      %v658 = vsel %vm242, %v641, 0
      %v661 = vsel %vm242, %v644, 0
      %663 = vmatprep.subr.bf16.mxu0 0
      %664 = vmatpush1.bf16.msra.mxu0 %v649
      %665 = vmatprep.subr.bf16.mxu0 0
      %666 = vmatpush1.bf16.msra.mxu0 0
      %667 = vmatprep.subr.bf16.mxu0 0
      %668 = vmatpush1.bf16.msra.mxu0 0
      %669 = vmatprep.subr.bf16.mxu0 0
      %670 = vmatpush1.bf16.msra.mxu0 0
      %671 = vmatprep.subr.bf16.mxu0 0
      %672 = vmatpush1.bf16.msra.mxu0 0
      %673 = vmatprep.subr.bf16.mxu0 0
      %674 = vmatpush1.bf16.msra.mxu0 0
      %675 = vmatprep.subr.bf16.mxu0 0
      %676 = vmatpush1.bf16.msra.mxu0 0
      %677 = vmatprep.subr.bf16.mxu0 0
      %678 = vmatpush1.bf16.msra.mxu0 0
      %679 = vmatprep.subr.bf16.mxu0 0
      %680 = vmatpush1.bf16.msra.mxu0 0
      %681 = vmatprep.subr.bf16.mxu0 0
      %682 = vmatpush1.bf16.msra.mxu0 0
      %683 = vmatprep.subr.bf16.mxu0 0
      %684 = vmatpush1.bf16.msra.mxu0 0
      %685 = vmatprep.subr.bf16.mxu0 0
      %686 = vmatpush1.bf16.msra.mxu0 0
      %687 = vmatprep.subr.bf16.mxu0 0
      %688 = vmatpush1.bf16.msra.mxu0 0
      %689 = vmatprep.subr.bf16.mxu0 0
      %690 = vmatpush1.bf16.msra.mxu0 0
      %691 = vmatprep.subr.bf16.mxu0 0
      %692 = vmatpush1.bf16.msra.mxu0 0
      %693 = vmatprep.subr.bf16.mxu0 0
      %694 = vmatpush1.bf16.msra.mxu0 0
      %695 = vmatprep.mubr.bf16.mxu0 0
      %696 = vmatmul.mubr.bf16.gmra.mrb[0].mxu0 %v652
      %v697 = vpop.f32.mrb[0].mxu0
      %v698 = vadd.f32 0.0, %v697
      %v699 = vpop.f32.mrb[0].mxu0
      %v700 = vpop.f32.mrb[0].mxu0
      %v701 = vadd.f32 0.0, %v700
      %v702 = vpop.f32.mrb[0].mxu0
      %703 = vmatprep.mubr.bf16.mxu0 0
      %704 = vmatmul.mubr.bf16.gmra.mrb[0].mxu0 %v655
      %v705 = vpop.f32.mrb[0].mxu0
      %v706 = vadd.f32 0.0, %v705
      %v707 = vpop.f32.mrb[0].mxu0
      %v708 = vpop.f32.mrb[0].mxu0
      %v709 = vadd.f32 0.0, %v708
      %v710 = vpop.f32.mrb[0].mxu0
      %711 = vmatprep.mubr.bf16.mxu0 0
      %712 = vmatmul.mubr.bf16.gmra.mrb[0].mxu0 %v658
      %v713 = vpop.f32.mrb[0].mxu0
      %v714 = vadd.f32 0.0, %v713
      %v715 = vpop.f32.mrb[0].mxu0
      %v716 = vpop.f32.mrb[0].mxu0
      %v717 = vadd.f32 0.0, %v716
      %v718 = vpop.f32.mrb[0].mxu0
      %719 = vmatprep.mubr.bf16.mxu0 0
      %720 = vmatmul.mubr.bf16.gmra.mrb[0].mxu0 %v661
      %v721 = vpop.f32.mrb[0].mxu0
      %v722 = vadd.f32 0.0, %v721
      %v723 = vpop.f32.mrb[0].mxu0
      %v724 = vpop.f32.mrb[0].mxu0
      %v725 = vpop.f32.mrb[0].mxu0
      %726 = vdwg.mxu0
      %v727 = vadd.f32 %v576, %v698
      %v728 = vadd.f32 %v577, %v701
      %v729 = vadd.f32 %v578, %v706
      %v730 = vadd.f32 %v579, %v709
      %v731 = vadd.f32 %v580, %v714
      %v732 = vadd.f32 %v581, %v717
      %v733 = vadd.f32 %v582, %v722
      %v734 = vmax.f32 %v727, 0.0
      %v735 = vmax.f32 %v728, 0.0
      %v736 = vmax.f32 %v729, 0.0
      %v737 = vmax.f32 %v730, 0.0
      %v738 = vmax.f32 %v731, 0.0
      %v739 = vmax.f32 %v732, 0.0
      %v740 = vmax.f32 %v733, 0.0
      %v741 = vpack.c.bf16 %v735, %v734
      %v742 = vpack.c.bf16 %v737, %v736
      %v743 = vpack.c.bf16 %v739, %v738
      %v744 = vpack.c.bf16 %v740, %v740
      %v749 = vunpack.c.l.b16 %v741
      %v750 = vunpack.c.h.b16 %v741
      %v751 = vunpack.c.l.b16 %v742
      %v752 = vunpack.c.h.b16 %v742
      %v753 = vunpack.c.l.b16 %v743
      %v754 = vunpack.c.h.b16 %v743
      %v755 = vunpack.c.l.b16 %v744
      %v756 = vpack.c.b16 %v749, %v749
      %v757 = vpack.c.b16 %v750, %v750
      %v758 = vpack.c.b16 %v751, %v751
      %v759 = vpack.c.b16 %v752, %v752
      %v760 = vpack.c.b16 %v753, %v753
      %v761 = vpack.c.b16 %v754, %v754
      %v762 = vpack.c.b16 %v755, %v755
      %vm770 = vcmask 60416
      %771 = vst.msk [vmem:[%s206] sm:$0xf] %vm770, %v756
      %772 = vst.msk [vmem:[%s206 + $0x4] sm:$0xf] %vm770, %v757
      %773 = vst.msk [vmem:[%s206 + $0x8] sm:$0xf] %vm770, %v758
      %774 = vst.msk [vmem:[%s206 + $0xc] sm:$0xf] %vm770, %v759
      %775 = vst.msk [vmem:[%s206 + $0x10] sm:$0xf] %vm770, %v760
      %776 = vst.msk [vmem:[%s206 + $0x14] sm:$0xf] %vm770, %v761
      %777 = vst.msk [vmem:[%s206 + $0x18] sm:$0xf] %vm770, %v762
      %p778 = scmp.lt.s32.totalorder %s18, 1
      %s779 = scalar_select %p778, %s18, 1
      %p780 = scmp.lt.s32.totalorder %s19, 0
      %s781 = scalar_select %p780, %s19, 0
      %s782 = smul.addr %s781, 7
      %s783 = smul.addr %s779, 7
      %s784 = sadd.s32 %s782, %s783
      %s785 = smul.addr %s784, 4
      %s786 = scalar_lea.vmem %s3, %s785
      // Predicated region
      $region33: #{conv_block_forward.1} parent=31 // pred_check
        %p787 = pneg %p116
      $region34: #{conv_block_forward.1} parent=31 // pred_check_branch
        %789 = sbr.rel (%p787) target = $region36
      $region35: #{conv_block_forward.1} parent=31 // pred_region
        _
      $region36: #{conv_block_forward.1} parent=31 // pred_fallthru
        _
    $region32: #{conv_block_forward.1} parent=5 // pred_fallthru
      _
    %p790 = scmp.le.s32.totalorder 2, %s9
    // Predicated region
    $region37: #{conv_block_forward.1} parent=5 // pred_check
      %p791 = pneg %p790
    $region38: #{conv_block_forward.1} parent=5 // pred_check_branch
      %793 = sbr.rel (%p791) target = $region40
    $region39: #{conv_block_forward.1} parent=5 // pred_region
      %s794 = ssub.s32 %s9, 2
      // Predicated region
      $region41: #{conv_block_forward.1} parent=39 // pred_check
        %p795 = pneg %p122
      $region42: #{conv_block_forward.1} parent=39 // pred_check_branch
        %797 = sbr.rel (%p795) target = $region44
      $region43: #{conv_block_forward.1} parent=39 // pred_region
        %p798 = scmp.lt.s32.totalorder %s20, 1
        %s799 = scalar_select %p798, %s20, 1
        %p800 = scmp.lt.s32.totalorder %s21, 0
        %s801 = scalar_select %p800, %s21, 0
        %s802 = smul.addr %s801, 7
        %s803 = smul.addr %s799, 7
        %s804 = sadd.s32 %s802, %s803
        %s805 = smul.addr %s804, 4
        %s806 = scalar_lea.vmem %s3, %s805
      $region44: #{conv_block_forward.1} parent=39 // pred_fallthru
        _
    $region40: #{conv_block_forward.1} parent=5 // pred_fallthru
      _
  $region6: #{conv_block_forward.1} parent=0 // loop_footer
    %s13 = sadd.s32 1, %s9
  $region7: #{conv_block_forward.1} parent=0 // loop_footer_branch
    %8 = sbr.rel target = $region3
  $region8: #{conv_block_forward.1} parent=0 // loop_exit
    _

</llo_original>
